<compile_context>
chip_gen: v5e
topology: v5e:2x2
jax: 0.10.0
libtpu: 0.0.40
codegen_flags: <defaults>
</compile_context>

<pallas_src>
import jax
import jax.numpy as jnp
from jax import lax
from jax.experimental import pallas as pl
from jax.experimental.pallas import tpu as pltpu


def modrelu_kernel(thr_ref, x_ref, o_ref):
    # x_ref block: (R, Lb) float32, lanes hold interleaved (re, im) pairs.
    x = x_ref[...]
    sq = x * x                                     # re^2 / im^2 per lane
    Lb = x.shape[-1]

    lane = lax.broadcasted_iota(jnp.int32, x.shape, dimension=x.ndim - 1)
    even = (lane & 1) == 0                         # True on 're' lanes

    # Partner squared value sits on the adjacent lane.  Compute both single-lane
    # rotations (XLU ops, free slot here) and use a rolled-iota probe so the
    # result is correct regardless of the rotation direction convention.
    r_a = pltpu.roll(sq, 1, axis=x.ndim - 1)
    r_b = pltpu.roll(sq, Lb - 1, axis=x.ndim - 1)
    i_a = pltpu.roll(lane, 1, axis=x.ndim - 1)
    nxt_idx = jnp.where(lane == (Lb - 1), 0, lane + 1)
    a_is_next = i_a == nxt_idx                     # does roll-by-1 bring lane i+1?
    nxt = jnp.where(a_is_next, r_a, r_b)           # value from lane i+1
    prv = jnp.where(a_is_next, r_b, r_a)           # value from lane i-1

    pair = sq + jnp.where(even, nxt, prv)          # re^2 + im^2 on BOTH lanes of a pair
    keep = pair >= thr_ref[...]                    # (R, 1) threshold broadcast over lanes
    o_ref[...] = jnp.where(keep, x, jnp.zeros_like(x))


def modrelu(x, b):
    """x: (N, C, ..., 2) float32, b: (C,) float32 -> same shape as x."""
    assert x.ndim >= 3 and x.shape[-1] == 2
    N, C = x.shape[0], x.shape[1]
    NC = N * C
    L = 1
    for d in x.shape[2:]:
        L *= d                                     # includes the trailing 2 -> always even

    # Free, contiguous view: rows = (n, c) pairs, lanes = interleaved spatial*(re,im).
    xk = x.reshape(NC, L)

    # Per-row gate threshold: keep iff |z|^2 >= thr.
    #   b >= 0  -> always keep  -> thr = -1 (|z|^2 >= 0 > -1)
    #   b <  0  -> mag + b >= 0  <=>  |z|^2 >= b^2
    b_rows = jnp.tile(b, N)                        # (NC,), channel bias per row
    thr = jnp.where(b_rows >= 0, jnp.float32(-1.0), b_rows * b_rows)
    thr = thr.astype(x.dtype).reshape(NC, 1)

    # Tile sizing: ~4 MiB input tiles (good on v7x's 64 MiB VMEM / 3.2 TB/s HBM,
    # comfortably amortizes the ~0.35 us per-step overhead on v5e/v6e too).
    elem = x.dtype.itemsize
    target = 4 * 1024 * 1024
    if 8 * L * elem > target and L > 128:
        bc = max(128, min(L, ((target // (8 * elem)) // 128) * 128))
    else:
        bc = L                                     # full lane extent (always legal)
    rows_fit = max(1, target // (bc * elem))
    if rows_fit >= NC:
        br = NC                                    # full row extent (always legal)
    else:
        br = min(NC, max(8, (rows_fit // 8) * 8))  # multiple of 8 (or full extent)

    grid = (pl.cdiv(NC, br), pl.cdiv(L, bc))

    out = pl.pallas_call(
        modrelu_kernel,
        out_shape=jax.ShapeDtypeStruct((NC, L), x.dtype),
        grid=grid,
        in_specs=[
            pl.BlockSpec((br, 1), lambda i, j: (i, 0)),    # per-row threshold
            pl.BlockSpec((br, bc), lambda i, j: (i, j)),   # x tile
        ],
        out_specs=pl.BlockSpec((br, bc), lambda i, j: (i, j)),
        compiler_params=pltpu.CompilerParams(
            dimension_semantics=("parallel", "parallel"),
            vmem_limit_bytes=48 * 1024 * 1024,
        ),
    )(thr, xk)

    return out.reshape(x.shape)


def modrelu_ref(x, b):
    mag = jnp.sqrt(x[..., 0] ** 2 + x[..., 1] ** 2)        # (N, C, H, W)
    gate = mag + b[None, :, None, None]                    # (N, C, H, W)
    return jnp.where(gate[..., None] < 0.0, jnp.zeros_like(x), x)


if __name__ == "__main__":
    key = jax.random.PRNGKey(0)
    kx, kb = jax.random.split(key)

    N, C, H, W = 2, 4, 16, 16
    x = jax.random.normal(kx, (N, C, H, W, 2), dtype=jnp.float32)
    # deterministic init matching b.data.uniform_(-2, 0)
    b = jax.random.uniform(kb, (C,), minval=-2.0, maxval=0.0, dtype=jnp.float32)

    out = jax.block_until_ready(modrelu(x, b))
    ref = modrelu_ref(x, b)

    assert out.shape == x.shape and out.dtype == x.dtype
    assert jnp.allclose(out, ref, atol=1e-5), "mismatch vs reference"

    print("KERNEL_OK")
</pallas_src>

<mosaic_0001>
module attributes {stable_mosaic.version = 11 : i64} {
  func.func @modrelu_kernel(%arg0: i32, %arg1: i32, %arg2: memref<8x1xf32, #tpu.memory_space<vmem>>, %arg3: memref<8x512xf32, #tpu.memory_space<vmem>>, %arg4: memref<8x512xf32, #tpu.memory_space<vmem>>) attributes {dimension_semantics = [#tpu.dimension_semantics<parallel>, #tpu.dimension_semantics<parallel>], iteration_bounds = array<i64: 1, 1>, scalar_prefetch = 0 : i64, scratch_operands = 0 : i64, tpu.core_type = #tpu.core_type<tc>, window_params = [{transform_indices = @transform_0, window_bounds = array<i64: 8, 1>}, {transform_indices = @transform_1, window_bounds = array<i64: 8, 512>}, {transform_indices = @transform_2, window_bounds = array<i64: 8, 512>}]} {
    %c0 = arith.constant 0 : index
    %c0_0 = arith.constant 0 : index
    %0 = vector.load %arg3[%c0, %c0_0] : memref<8x512xf32, #tpu.memory_space<vmem>>, vector<8x512xf32>
    %1 = arith.mulf %0, %0 : vector<8x512xf32>
    %2 = tpu.iota {dimensions = array<i32: 1>} : vector<8x512xi32>
    %c1_i32 = arith.constant 1 : i32
    %3 = vector.broadcast %c1_i32 : i32 to vector<8x512xi32>
    %4 = arith.andi %2, %3 : vector<8x512xi32>
    %c0_i32 = arith.constant 0 : i32
    %5 = vector.broadcast %c0_i32 : i32 to vector<8x512xi32>
    %6 = arith.cmpi eq, %4, %5 : vector<8x512xi32>
    %c1_i32_1 = arith.constant 1 : i32
    %7 = tpu.dynamic_rotate %1 by %c1_i32_1 dim 1 : vector<8x512xf32>, i32 -> vector<8x512xf32>
    %c511_i32 = arith.constant 511 : i32
    %8 = tpu.dynamic_rotate %1 by %c511_i32 dim 1 : vector<8x512xf32>, i32 -> vector<8x512xf32>
    %c1_i32_2 = arith.constant 1 : i32
    %9 = tpu.dynamic_rotate %2 by %c1_i32_2 dim 1 : vector<8x512xi32>, i32 -> vector<8x512xi32>
    %c511_i32_3 = arith.constant 511 : i32
    %10 = vector.broadcast %c511_i32_3 : i32 to vector<8x512xi32>
    %11 = arith.cmpi eq, %2, %10 : vector<8x512xi32>
    %c1_i32_4 = arith.constant 1 : i32
    %12 = vector.broadcast %c1_i32_4 : i32 to vector<8x512xi32>
    %13 = arith.addi %2, %12 : vector<8x512xi32>
    %c0_i32_5 = arith.constant 0 : i32
    %14 = vector.broadcast %c0_i32_5 : i32 to vector<8x512xi32>
    %15 = arith.select %11, %14, %13 : vector<8x512xi1>, vector<8x512xi32>
    %16 = arith.cmpi eq, %9, %15 : vector<8x512xi32>
    %17 = arith.select %16, %7, %8 : vector<8x512xi1>, vector<8x512xf32>
    %18 = arith.select %16, %8, %7 : vector<8x512xi1>, vector<8x512xf32>
    %19 = arith.select %6, %17, %18 : vector<8x512xi1>, vector<8x512xf32>
    %20 = arith.addf %1, %19 : vector<8x512xf32>
    %c0_6 = arith.constant 0 : index
    %c0_7 = arith.constant 0 : index
    %21 = vector.load %arg2[%c0_6, %c0_7] : memref<8x1xf32, #tpu.memory_space<vmem>>, vector<8x1xf32>
    %22 = vector.broadcast %21 : vector<8x1xf32> to vector<8x512xf32>
    %23 = arith.cmpf oge, %20, %22 : vector<8x512xf32>
    %cst = arith.constant 0.000000e+00 : f32
    %24 = vector.broadcast %cst : f32 to vector<8x512xf32>
    %25 = arith.select %23, %0, %24 : vector<8x512xi1>, vector<8x512xf32>
    %c0_8 = arith.constant 0 : index
    %c0_9 = arith.constant 0 : index
    %26 = vector.load %arg4[%c0_8, %c0_9] : memref<8x512xf32, #tpu.memory_space<vmem>>, vector<8x512xf32>
    tpu.vector_store %arg4[%c0_8, %c0_9], %25 {strides = array<i32>} : memref<8x512xf32, #tpu.memory_space<vmem>>, vector<8x512xf32>,
    return
  }
  func.func @transform_0(%arg0: i32, %arg1: i32) -> (i32, i32) {
    %c0_i32 = arith.constant 0 : i32
    %c0_i32_0 = arith.constant 0 : i32
    return %arg0, %c0_i32 : i32, i32
  }
  func.func @transform_1(%arg0: i32, %arg1: i32) -> (i32, i32) {
    %c0_i32 = arith.constant 0 : i32
    return %arg0, %arg1 : i32, i32
  }
  func.func @transform_2(%arg0: i32, %arg1: i32) -> (i32, i32) {
    %c0_i32 = arith.constant 0 : i32
    return %arg0, %arg1 : i32, i32
  }
}

</mosaic_0001>

<llo_original>
// kernel: tpu_custom_call.1
$region0: #{tpu_custom_call.1}
  #allocation0 [shape = 'u32[]', space=smem, size = 0x4, offset = 0x4, fixed_abs, tag = 'smem constant byte address 0x4 - core index']
  #allocation1 [shape = 'u32[72,128]{1,0:T(1,128)}', space=vmem, size = 0x9000, scoped, tag = 'internal scratch']
  %s0 = inlined_call_operand.vmem [shape: f32[8,1], index: 0, kind: input, shape index: {}]
  %s1 = inlined_call_operand.hbm [shape: f32[8,512], index: 1, kind: input, shape index: {}]
  %s2 = inlined_call_operand.hbm [shape: f32[8,512], index: 2, kind: output, shape index: {}]
  %s3 = sld [smem:[#allocation0]]
  $region22: #{tpu_custom_call.1} parent=0
    _
  %s5 = ssub.s32 1, %s3
  %s6 = scalar_select 0, %s5, %s3
  $region1: #{tpu_custom_call.1} parent=0
    #allocation2 [shape = 'u8[16384]{0}', space=vmem, size = 0x4000, scoped, tag = 'input window, operand 1, single buffered']
    #allocation3 [shape = 's32[1]{0}', space=sflag, size = 0x4, scoped, tag = 'scoped memory for tpu_custom_call.1']
    #allocation4 [shape = 's32[1]{0}', space=sflag, size = 0x4, scoped, tag = 'scoped memory for tpu_custom_call.1']
    #allocation5 [shape = 'u8[16384]{0}', space=vmem, size = 0x4000, scoped, tag = 'output window, operand 0, single buffered']
    %7 = vsyncpa [#allocation3], 0
    %8 = vsyncpa [#allocation4], 0
    // Predicated region
    $region2: #{tpu_custom_call.1} parent=1 // pred_check
      _
    $region3: #{tpu_custom_call.1} parent=1 // pred_check_branch
      %10 = sbr.rel (0) target = $region5
    $region4: #{tpu_custom_call.1} parent=1 // pred_region
      _
    $region5: #{tpu_custom_call.1} parent=1 // pred_fallthru
      _
    // Predicated region
    $region6: #{tpu_custom_call.1} parent=1 // pred_check
      _
    $region7: #{tpu_custom_call.1} parent=1 // pred_check_branch
      %12 = sbr.rel (0) target = $region9
    $region8: #{tpu_custom_call.1} parent=1 // pred_region
      %14 = vsyncadd [#allocation3], 0
      %s16 = sshll.u32 %s1, 4
      %s17 = int_to_ptr.hbm [resolvable:$true] %s16
      %s18 = sshll.u32 [#allocation2], 4
      %s19 = int_to_ptr.vmem [resolvable:$true] %s18
      %21 = dma.hbm_to_vmem [thread:$0]  %s17, 512, %s19, [#allocation3]
    $region9: #{tpu_custom_call.1} parent=1 // pred_fallthru
      _
    // Predicated region
    $region10: #{tpu_custom_call.1} parent=1 // pred_check
      _
    $region11: #{tpu_custom_call.1} parent=1 // pred_check_branch
      %23 = sbr.rel (0) target = $region13
    $region12: #{tpu_custom_call.1} parent=1 // pred_region
      %25 = dma.done [#allocation3], 512
    $region13: #{tpu_custom_call.1} parent=1 // pred_fallthru
      _
    %v26 = vld [vmem:[#allocation2] sm:$0xff]
    %v27 = vld [vmem:[#allocation2 + $0x8] sm:$0xff]
    %v28 = vld [vmem:[#allocation2 + $0x10] sm:$0xff]
    %v29 = vld [vmem:[#allocation2 + $0x18] sm:$0xff]
    %v30 = vmul.f32 %v26, %v26
    %v31 = vmul.f32 %v27, %v27
    %v32 = vmul.f32 %v28, %v28
    %v33 = vmul.f32 %v29, %v29
    %v34 = vlaneseq
    %v35 = vand.u32 %v34, 127
    %v36 = vadd.s32 %v35, 128
    %v37 = vadd.s32 %v35, 256
    %v38 = vadd.s32 %v35, 384
    %v39 = vand.u32 %v35, 1
    %v40 = vand.u32 %v36, 1
    %v41 = vand.u32 %v37, 1
    %v42 = vand.u32 %v38, 1
    %vm43 = vcmp.eq.s32.totalorder %v39, 0
    %vm44 = vcmp.eq.s32.totalorder %v40, 0
    %vm45 = vcmp.eq.s32.totalorder %v41, 0
    %vm46 = vcmp.eq.s32.totalorder %v42, 0
    %47 = vrot.lane.b32.xlu0 %v30, 1
    %v48 = vpop.permute.xlu0 %47
    %49 = vrot.lane.b32.xlu0 %v31, 1
    %v50 = vpop.permute.xlu0 %49
    %51 = vrot.lane.b32.xlu0 %v32, 1
    %v52 = vpop.permute.xlu0 %51
    %53 = vrot.lane.b32.xlu0 %v33, 1
    %v54 = vpop.permute.xlu0 %53
    %vm55 = vcmp.lt.s32.totalorder %v35, 1
    %v56 = vsel %vm55, %v52, %v54
    %v57 = vsel %vm55, %v50, %v52
    %v58 = vsel %vm55, %v48, %v50
    %v59 = vsel %vm55, %v54, %v48
    %60 = vrot.lane.b32.xlu0 %v30, 127
    %v61 = vpop.permute.xlu0 %60
    %62 = vrot.lane.b32.xlu0 %v31, 127
    %v63 = vpop.permute.xlu0 %62
    %64 = vrot.lane.b32.xlu0 %v32, 127
    %v65 = vpop.permute.xlu0 %64
    %66 = vrot.lane.b32.xlu0 %v33, 127
    %v67 = vpop.permute.xlu0 %66
    %vm68 = vcmp.lt.s32.totalorder %v35, 127
    %v69 = vsel %vm68, %v65, %v67
    %v70 = vsel %vm68, %v63, %v65
    %v71 = vsel %vm68, %v61, %v63
    %v72 = vsel %vm68, %v67, %v61
    %73 = vrot.lane.b32.xlu0 %v35, 1
    %v74 = vpop.permute.xlu0 %73
    %75 = vrot.lane.b32.xlu0 %v36, 1
    %v76 = vpop.permute.xlu0 %75
    %77 = vrot.lane.b32.xlu0 %v37, 1
    %v78 = vpop.permute.xlu0 %77
    %79 = vrot.lane.b32.xlu0 %v38, 1
    %v80 = vpop.permute.xlu0 %79
    %v81 = vsel %vm55, %v78, %v80
    %v82 = vsel %vm55, %v76, %v78
    %v83 = vsel %vm55, %v74, %v76
    %v84 = vsel %vm55, %v80, %v74
    %vm85 = vcmp.eq.s32.totalorder %v35, 511
    %vm86 = vcmp.eq.s32.totalorder %v36, 511
    %vm87 = vcmp.eq.s32.totalorder %v37, 511
    %vm88 = vcmp.eq.s32.totalorder %v38, 511
    %v89 = vadd.s32 %v35, 1
    %v90 = vadd.s32 %v36, 1
    %v91 = vadd.s32 %v37, 1
    %v92 = vadd.s32 %v38, 1
    %v93 = vsel %vm85, 0, %v89
    %v94 = vsel %vm86, 0, %v90
    %v95 = vsel %vm87, 0, %v91
    %v96 = vsel %vm88, 0, %v92
    %vm97 = vcmp.eq.s32.totalorder %v84, %v93
    %vm98 = vcmp.eq.s32.totalorder %v83, %v94
    %vm99 = vcmp.eq.s32.totalorder %v82, %v95
    %vm100 = vcmp.eq.s32.totalorder %v81, %v96
    %v101 = vsel %vm97, %v59, %v71
    %v102 = vsel %vm98, %v58, %v70
    %v103 = vsel %vm99, %v57, %v69
    %v104 = vsel %vm100, %v56, %v72
    %v105 = vsel %vm97, %v71, %v59
    %v106 = vsel %vm98, %v70, %v58
    %v107 = vsel %vm99, %v69, %v57
    %v108 = vsel %vm100, %v72, %v56
    %v109 = vsel %vm43, %v101, %v105
    %v110 = vsel %vm44, %v102, %v106
    %v111 = vsel %vm45, %v103, %v107
    %v112 = vsel %vm46, %v104, %v108
    %v113 = vadd.f32 %v30, %v109
    %v114 = vadd.f32 %v31, %v110
    %v115 = vadd.f32 %v32, %v111
    %v116 = vadd.f32 %v33, %v112
    %v117 = vld [vmem:[%s0] sm:$0xff]
    %119 = vset.pattern.permute.xlu0 0
    %120 = vperm.xlu0 %119, %v117
    %v121 = vpop.permute.xlu0 %120
    %vm123 = vcmp.ge.f32.partialorder %v113, %v121
    %vm124 = vcmp.ge.f32.partialorder %v114, %v121
    %vm125 = vcmp.ge.f32.partialorder %v115, %v121
    %vm126 = vcmp.ge.f32.partialorder %v116, %v121
    %v127 = vsel %vm123, %v26, 0.0
    %v128 = vsel %vm124, %v27, 0.0
    %v129 = vsel %vm125, %v28, 0.0
    %v130 = vsel %vm126, %v29, 0.0
    %131 = vst [vmem:[#allocation5] sm:$0xff] %v127
    %132 = vst [vmem:[#allocation5 + $0x8] sm:$0xff] %v128
    %133 = vst [vmem:[#allocation5 + $0x10] sm:$0xff] %v129
    %134 = vst [vmem:[#allocation5 + $0x18] sm:$0xff] %v130
    // Predicated region
    $region14: #{tpu_custom_call.1} parent=1 // pred_check
      _
    $region15: #{tpu_custom_call.1} parent=1 // pred_check_branch
      %136 = sbr.rel (0) target = $region17
    $region16: #{tpu_custom_call.1} parent=1 // pred_region
      %138 = vsyncadd [#allocation4], 0
      %s140 = sshll.u32 [#allocation5], 4
      %s141 = int_to_ptr.vmem [resolvable:$true] %s140
      %s142 = sshll.u32 %s2, 4
      %s143 = int_to_ptr.hbm [resolvable:$true] %s142
      %145 = dma.vmem_to_hbm [thread:$0]  %s141, 512, %s143, [#allocation4]
    $region17: #{tpu_custom_call.1} parent=1 // pred_fallthru
      _
    // Predicated region
    $region18: #{tpu_custom_call.1} parent=1 // pred_check
      _
    $region19: #{tpu_custom_call.1} parent=1 // pred_check_branch
      %147 = sbr.rel (0) target = $region21
    $region20: #{tpu_custom_call.1} parent=1 // pred_region
      %149 = dma.done [#allocation4], 512
    $region21: #{tpu_custom_call.1} parent=1 // pred_fallthru
      _
    %150 = vsyncpa [#allocation3], 1
    %151 = vsyncpa [#allocation4], 1

</llo_original>
